<compile_context>
chip_gen: v5e
topology: v5e:2x2
jax: 0.10.0
libtpu: 0.0.40
codegen_flags: <defaults>
</compile_context>

<pallas_src>
import math
import functools

import jax
import jax.numpy as jnp
from jax import lax
from jax.experimental import pallas as pl
from jax.experimental.pallas import tpu as pltpu


def _embedder_kernel(ids_ref, table_ref, out_ref, rows_ref, sem_ref, *,
                     token_block, scale):
    # ids_ref:   (n_pad,) int32 token ids in SMEM (scalar prefetch)
    # table_ref: (ntoken, d_model) embedding table, left in HBM (pl.ANY)
    # out_ref:   (token_block, d_model) output tile (VMEM, auto-pipelined)
    # rows_ref:  (token_block, d_model) VMEM scratch for the gathered rows
    # sem_ref:   (1,) DMA completion semaphore shared by all row copies
    base = pl.program_id(0) * token_block

    def start_row(r, carry):
        tok = ids_ref[base + r]
        pltpu.make_async_copy(
            table_ref.at[pl.ds(tok, 1), :],
            rows_ref.at[pl.ds(r, 1), :],
            sem_ref.at[0],
        ).start()
        return carry

    # Issue all row gathers first so the DMAs overlap each other.
    lax.fori_loop(0, token_block, start_row, 0)

    def wait_row(r, carry):
        # For a wait only the shape and semaphore matter; one wait per copy.
        pltpu.make_async_copy(
            table_ref.at[pl.ds(0, 1), :],
            rows_ref.at[pl.ds(0, 1), :],
            sem_ref.at[0],
        ).wait()
        return carry

    lax.fori_loop(0, token_block, wait_row, 0)

    out_ref[...] = (rows_ref[...] * scale).astype(out_ref.dtype)


def embedder_forward(x, table, *, token_block=128):
    """Pallas equivalent of `Embedder.forward`.

    x:     (B, S) integer token ids
    table: (ntoken, d_model) embedding weights
    returns (B, S, d_model) = table[x] * sqrt(d_model)
    """
    ntoken, d_model = table.shape
    scale = float(math.sqrt(d_model))
    b, s = x.shape
    n = b * s
    n_blocks = pl.cdiv(n, token_block)
    n_pad = n_blocks * token_block

    # Flatten, clamp (so a rogue id can never cause an out-of-bounds DMA) and
    # pad to a multiple of the token block; padded rows gather token 0 and are
    # sliced off after the kernel.
    ids = jnp.clip(x.reshape(-1).astype(jnp.int32), 0, ntoken - 1)
    ids = jnp.pad(ids, (0, n_pad - n))

    out = pl.pallas_call(
        functools.partial(_embedder_kernel,
                          token_block=token_block, scale=scale),
        out_shape=jax.ShapeDtypeStruct((n_pad, d_model), table.dtype),
        grid_spec=pltpu.PrefetchScalarGridSpec(
            num_scalar_prefetch=1,               # ids -> SMEM
            grid=(n_blocks,),
            in_specs=[
                pl.BlockSpec(memory_space=pl.ANY),   # table stays in HBM
            ],
            out_specs=pl.BlockSpec((token_block, d_model),
                                   lambda i, ids: (i, 0)),
            scratch_shapes=[
                pltpu.VMEM((token_block, d_model), table.dtype),
                pltpu.SemaphoreType.DMA((1,)),
            ],
        ),
        compiler_params=pltpu.CompilerParams(
            dimension_semantics=("parallel",)),      # token axis shards on v7x
    )(ids, table)

    return out[:n].reshape(b, s, d_model)


if __name__ == "__main__":
    # Small, deterministic setup consistent with the module:
    #   ntoken=16, d_model=32, batch=2, seq=8
    ntoken, d_model = 16, 32
    batch, seq = 2, 8

    key = jax.random.PRNGKey(0)
    k_table, k_ids = jax.random.split(key)

    # Deterministic "parameters" (synthetic init, no checkpoint load).
    table = jax.random.normal(k_table, (ntoken, d_model), dtype=jnp.float32)
    x = jax.random.randint(k_ids, (batch, seq), 0, ntoken, dtype=jnp.int32)

    out = embedder_forward(x, table)
    out = jax.block_until_ready(out)

    # Pure-JAX reference of the PyTorch forward: embedding(x) * sqrt(d_model)
    ref = table[x] * math.sqrt(d_model)
    assert out.shape == (batch, seq, d_model)
    assert jnp.allclose(out, ref, atol=1e-6, rtol=1e-6)

    print("KERNEL_OK")
</pallas_src>

<mosaic_0001>
module attributes {stable_mosaic.version = 11 : i64} {
  func.func @_embedder_kernel(%arg0: i32, %arg1: memref<128xi32, #tpu.memory_space<smem>>, %arg2: memref<16x32xf32, #tpu.memory_space<any>>, %arg3: memref<128x32xf32, #tpu.memory_space<vmem>>, %arg4: memref<128x32xf32, #tpu.memory_space<vmem>>, %arg5: memref<1x!tpu.dma_semaphore, #tpu.memory_space<semaphore_mem>>) attributes {dimension_semantics = [#tpu.dimension_semantics<parallel>], iteration_bounds = array<i64: 1>, scalar_prefetch = 1 : i64, scratch_operands = 2 : i64, tpu.core_type = #tpu.core_type<tc>, window_params = [{}, {transform_indices = @transform_1, window_bounds = array<i64: 128, 32>}]} {
    %c128_i32 = arith.constant 128 : i32
    %0 = arith.muli %arg0, %c128_i32 : i32
    %c0_i32 = arith.constant 0 : i32
    %c128_i32_0 = arith.constant 128 : i32
    %1 = arith.addi %c0_i32, %c128_i32_0 : i32
    %c1_i32 = arith.constant 1 : i32
    scf.for %arg6 = %c0_i32 to %1 step %c1_i32  : i32 {
      %7 = arith.addi %0, %arg6 : i32
      %8 = arith.index_cast %7 : i32 to index
      %9 = memref.load %arg1[%8] : memref<128xi32, #tpu.memory_space<smem>>
      %c0_i32_8 = arith.constant 0 : i32
      %c0_i32_9 = arith.constant 0 : i32
      %10 = tpu.memref_slice %arg2[%9, %c0_i32_9] : memref<16x32xf32, #tpu.memory_space<any>> -> memref<1x32xf32, #tpu.memory_space<any>>
      %c0_i32_10 = arith.constant 0 : i32
      %11 = tpu.memref_slice %arg4[%arg6, %c0_i32_10] : memref<128x32xf32, #tpu.memory_space<vmem>> -> memref<1x32xf32, #tpu.memory_space<vmem>>
      %12 = tpu.memref_slice %arg5[%c0_i32_8] : memref<1x!tpu.dma_semaphore, #tpu.memory_space<semaphore_mem>> -> memref<1x!tpu.dma_semaphore, #tpu.memory_space<semaphore_mem>>
      %13 = tpu.memref_squeeze %12 : memref<1x!tpu.dma_semaphore, #tpu.memory_space<semaphore_mem>> -> memref<!tpu.dma_semaphore, #tpu.memory_space<semaphore_mem>>
      tpu.enqueue_dma source(%10 : memref<1x32xf32, #tpu.memory_space<any>>) target(%11 : memref<1x32xf32, #tpu.memory_space<vmem>>) target_semaphore(%13 : memref<!tpu.dma_semaphore, #tpu.memory_space<semaphore_mem>>)
    }
    %c128_i32_1 = arith.constant 128 : i32
    %c0_i32_2 = arith.constant 0 : i32
    %c128_i32_3 = arith.constant 128 : i32
    %2 = arith.addi %c0_i32_2, %c128_i32_3 : i32
    %c1_i32_4 = arith.constant 1 : i32
    scf.for %arg6 = %c0_i32_2 to %2 step %c1_i32_4  : i32 {
      %c0_i32_8 = arith.constant 0 : i32
      %c0_i32_9 = arith.constant 0 : i32
      %c0_i32_10 = arith.constant 0 : i32
      %7 = tpu.memref_slice %arg2[%c0_i32_9, %c0_i32_10] : memref<16x32xf32, #tpu.memory_space<any>> -> memref<1x32xf32, #tpu.memory_space<any>>
      %c0_i32_11 = arith.constant 0 : i32
      %c0_i32_12 = arith.constant 0 : i32
      %8 = tpu.memref_slice %arg4[%c0_i32_11, %c0_i32_12] : memref<128x32xf32, #tpu.memory_space<vmem>> -> memref<1x32xf32, #tpu.memory_space<vmem>>
      %9 = tpu.memref_slice %arg5[%c0_i32_8] : memref<1x!tpu.dma_semaphore, #tpu.memory_space<semaphore_mem>> -> memref<1x!tpu.dma_semaphore, #tpu.memory_space<semaphore_mem>>
      %10 = tpu.memref_squeeze %9 : memref<1x!tpu.dma_semaphore, #tpu.memory_space<semaphore_mem>> -> memref<!tpu.dma_semaphore, #tpu.memory_space<semaphore_mem>>
      tpu.wait_dma2 semaphore(%10 : memref<!tpu.dma_semaphore, #tpu.memory_space<semaphore_mem>>) src(%7 : memref<1x32xf32, #tpu.memory_space<any>>) dst(%8 : memref<1x32xf32, #tpu.memory_space<vmem>>)
    }
    %c0 = arith.constant 0 : index
    %c0_5 = arith.constant 0 : index
    %3 = vector.load %arg4[%c0, %c0_5] : memref<128x32xf32, #tpu.memory_space<vmem>>, vector<128x32xf32>
    %cst = arith.constant 5.65685415 : f32
    %4 = vector.broadcast %cst : f32 to vector<128x32xf32>
    %5 = arith.mulf %3, %4 : vector<128x32xf32>
    %c0_6 = arith.constant 0 : index
    %c0_7 = arith.constant 0 : index
    %6 = vector.load %arg3[%c0_6, %c0_7] : memref<128x32xf32, #tpu.memory_space<vmem>>, vector<128x32xf32>
    tpu.vector_store %arg3[%c0_6, %c0_7], %5 {strides = array<i32>} : memref<128x32xf32, #tpu.memory_space<vmem>>, vector<128x32xf32>,
    return
  }
  func.func @transform_1(%arg0: i32, %arg1: memref<128xi32, #tpu.memory_space<smem>>) -> (i32, i32) {
    %c0_i32 = arith.constant 0 : i32
    %c0_i32_0 = arith.constant 0 : i32
    return %arg0, %c0_i32 : i32, i32
  }
}

</mosaic_0001>

<llo_original>
// kernel: tpu_custom_call.1
$region0: #{tpu_custom_call.1}
  #allocation0 [shape = 'u32[]', space=smem, size = 0x4, offset = 0x4, fixed_abs, tag = 'smem constant byte address 0x4 - core index']
  #allocation1 [shape = 'u32[72,128]{1,0:T(1,128)}', space=vmem, size = 0x9000, scoped, tag = 'internal scratch']
  #allocation2 [shape = 'f32[128,32]{1,0:T(8,128)}', space=vmem, size = 0x10000, scoped, tag = 'scratch operand']
  #allocation3 [shape = 's32[1]{0}', space=sflag, size = 0x4, scoped, tag = 'scratch operand']
  #allocation4 [shape = 's32[1]{0}', space=sflag, size = 0x4, scoped, tag = 'scoped memory for tpu_custom_call.1']
  #allocation5 [shape = 'u8[512]{0}', space=smem, size = 0x200, scoped, tag = 'prefetched SMEM operand 0']
  #allocation6 [shape = 's32[]', space=sflag, size = 0x4, offset = 0, fixed_abs, tag = 'sflag constant byte address 0x0 - dummy sync flag']
  #allocation7 [shape = 's32[]', space=sflag, size = 0x4, offset = 0, fixed_abs, tag = 'sflag constant byte address 0x0 - dummy sync flag']
  #allocation8 [shape = 'u32[]', space=smem, size = 0x4, offset = 0x44, fixed_abs, tag = 'smem constant byte address 0x44 - assertion arg 0']
  #allocation9 [shape = 'u32[]', space=smem, size = 0x4, offset = 0x48, fixed_abs, tag = 'smem constant byte address 0x48 - assertion arg 1']
  %s0 = inlined_call_operand.hbm [shape: s32[128], index: 0, kind: input, shape index: {}]
  %s1 = inlined_call_operand.hbm [shape: f32[16,32], index: 1, kind: input, shape index: {}]
  %s2 = inlined_call_operand.vmem [shape: f32[128,32], index: 2, kind: output, shape index: {}]
  %s3 = sld [smem:[#allocation0]]
  $region28: #{tpu_custom_call.1} parent=0
    _
  %s5 = ssub.s32 1, %s3
  %s6 = scalar_select 0, %s5, %s3
  %s8 = sshll.u32 %s0, 4
  %s9 = int_to_ptr.hbm [resolvable:$true] %s8
  %11 = dma.hbm_to_smem %s9, 16, [#allocation5], [#allocation4]
  %13 = dma.done [#allocation4], 16
  %14 = sfence
  %s15 = smul.u32 0, 128
  loop: start=0, step=1, limit=128
  $region2: #{tpu_custom_call.1} parent=0 // loop_pre_header
    _
  $region3: #{tpu_custom_call.1} parent=0 // loop_header
    %s17 = sphi 0, %s21
    %p18 = scmp.ge.s32.totalorder %s17, 128
  $region4: #{tpu_custom_call.1} parent=0 // loop_header_branch
    %20 = sbr.rel (%p18) target = $region8
  $region5: #{tpu_custom_call.1} parent=0 // loop_body
    %s22 = sadd.s32 %s15, %s17
    %s23 = sld [smem:[#allocation5 + %s22]]
    %s24 = scalar_lea.hbm %s1, %s23
    %s25 = scalar_lea.vmem [#allocation2], %s17
    // Predicated region
    $region9: #{tpu_custom_call.1} parent=5 // pred_check
      _
    $region10: #{tpu_custom_call.1} parent=5 // pred_check_branch
      %27 = sbr.rel target = $region12
    $region11: #{tpu_custom_call.1} parent=5 // pred_region
      %28 = sst [smem:[#allocation8]] [#allocation7]
      %29 = sst [smem:[#allocation9]] [#allocation6]
    $region12: #{tpu_custom_call.1} parent=5 // pred_fallthru
      _
    %31 = shalt.err (0)
    %s33 = sshll.u32 %s24, 4
    %s34 = int_to_ptr.hbm [resolvable:$true] %s33
    %s35 = sshll.u32 %s25, 4
    %s36 = int_to_ptr.vmem [resolvable:$true] %s35
    %38 = dma.hbm_to_vmem [thread:$0]  %s34, 16, %s36, [#allocation3]
  $region6: #{tpu_custom_call.1} parent=0 // loop_footer
    %s21 = sadd.s32 1, %s17
  $region7: #{tpu_custom_call.1} parent=0 // loop_footer_branch
    %16 = sbr.rel target = $region3
  $region8: #{tpu_custom_call.1} parent=0 // loop_exit
    _
  loop: start=0, step=1, limit=128
  $region13: #{tpu_custom_call.1} parent=0 // loop_pre_header
    _
  $region14: #{tpu_custom_call.1} parent=0 // loop_header
    %s40 = sphi 0, %s44
    %p41 = scmp.ge.s32.totalorder %s40, 128
  $region15: #{tpu_custom_call.1} parent=0 // loop_header_branch
    %43 = sbr.rel (%p41) target = $region19
  $region16: #{tpu_custom_call.1} parent=0 // loop_body
    %s45 = smul.u32 1, 1
    %s46 = sshll.u32 %s45, 4
    %47 = dma.done [#allocation3], %s46
  $region17: #{tpu_custom_call.1} parent=0 // loop_footer
    %s44 = sadd.s32 1, %s40
  $region18: #{tpu_custom_call.1} parent=0 // loop_footer_branch
    %39 = sbr.rel target = $region14
  $region19: #{tpu_custom_call.1} parent=0 // loop_exit
    _
  %v48 = vld [vmem:[#allocation2] sm:$0xff]
  %v49 = vld [vmem:[#allocation2 + $0x8] sm:$0xff]
  %v50 = vld [vmem:[#allocation2 + $0x10] sm:$0xff]
  %v51 = vld [vmem:[#allocation2 + $0x18] sm:$0xff]
  %v52 = vld [vmem:[#allocation2 + $0x20] sm:$0xff]
  %v53 = vld [vmem:[#allocation2 + $0x28] sm:$0xff]
  %v54 = vld [vmem:[#allocation2 + $0x30] sm:$0xff]
  %v55 = vld [vmem:[#allocation2 + $0x38] sm:$0xff]
  %v56 = vld [vmem:[#allocation2 + $0x40] sm:$0xff]
  %v57 = vld [vmem:[#allocation2 + $0x48] sm:$0xff]
  %v58 = vld [vmem:[#allocation2 + $0x50] sm:$0xff]
  %v59 = vld [vmem:[#allocation2 + $0x58] sm:$0xff]
  %v60 = vld [vmem:[#allocation2 + $0x60] sm:$0xff]
  %v61 = vld [vmem:[#allocation2 + $0x68] sm:$0xff]
  %v62 = vld [vmem:[#allocation2 + $0x70] sm:$0xff]
  %v63 = vld [vmem:[#allocation2 + $0x78] sm:$0xff]
  %v64 = vmul.f32 %v48, 5.656854
  %v65 = vmul.f32 %v49, 5.656854
  %v66 = vmul.f32 %v50, 5.656854
  %v67 = vmul.f32 %v51, 5.656854
  %v68 = vmul.f32 %v52, 5.656854
  %v69 = vmul.f32 %v53, 5.656854
  %v70 = vmul.f32 %v54, 5.656854
  %v71 = vmul.f32 %v55, 5.656854
  %v72 = vmul.f32 %v56, 5.656854
  %v73 = vmul.f32 %v57, 5.656854
  %v74 = vmul.f32 %v58, 5.656854
  %v75 = vmul.f32 %v59, 5.656854
  %v76 = vmul.f32 %v60, 5.656854
  %v77 = vmul.f32 %v61, 5.656854
  %v78 = vmul.f32 %v62, 5.656854
  %v79 = vmul.f32 %v63, 5.656854
  %vm80 = vcmask 261120
  %81 = vst.msk [vmem:[%s2] sm:$0xff] %vm80, %v64
  %82 = vst.msk [vmem:[%s2 + $0x8] sm:$0xff] %vm80, %v65
  %83 = vst.msk [vmem:[%s2 + $0x10] sm:$0xff] %vm80, %v66
  %84 = vst.msk [vmem:[%s2 + $0x18] sm:$0xff] %vm80, %v67
  %85 = vst.msk [vmem:[%s2 + $0x20] sm:$0xff] %vm80, %v68
  %86 = vst.msk [vmem:[%s2 + $0x28] sm:$0xff] %vm80, %v69
  %87 = vst.msk [vmem:[%s2 + $0x30] sm:$0xff] %vm80, %v70
  %88 = vst.msk [vmem:[%s2 + $0x38] sm:$0xff] %vm80, %v71
  %89 = vst.msk [vmem:[%s2 + $0x40] sm:$0xff] %vm80, %v72
  %90 = vst.msk [vmem:[%s2 + $0x48] sm:$0xff] %vm80, %v73
  %91 = vst.msk [vmem:[%s2 + $0x50] sm:$0xff] %vm80, %v74
  %92 = vst.msk [vmem:[%s2 + $0x58] sm:$0xff] %vm80, %v75
  %93 = vst.msk [vmem:[%s2 + $0x60] sm:$0xff] %vm80, %v76
  %94 = vst.msk [vmem:[%s2 + $0x68] sm:$0xff] %vm80, %v77
  %95 = vst.msk [vmem:[%s2 + $0x70] sm:$0xff] %vm80, %v78
  %96 = vst.msk [vmem:[%s2 + $0x78] sm:$0xff] %vm80, %v79
  // Predicated region
  $region20: #{tpu_custom_call.1} parent=0 // pred_check
    _
  $region21: #{tpu_custom_call.1} parent=0 // pred_check_branch
    %98 = sbr.rel (0) target = $region23
  $region22: #{tpu_custom_call.1} parent=0 // pred_region
    _
  $region23: #{tpu_custom_call.1} parent=0 // pred_fallthru
    _
  // Predicated region
  $region24: #{tpu_custom_call.1} parent=0 // pred_check
    _
  $region25: #{tpu_custom_call.1} parent=0 // pred_check_branch
    %100 = sbr.rel (0) target = $region27
  $region26: #{tpu_custom_call.1} parent=0 // pred_region
    _
  $region27: #{tpu_custom_call.1} parent=0 // pred_fallthru
    _
  %101 = vsyncmov [#allocation3]
  %s102 = vpop.sfrf %101
  %p103 = scmp.eq.s32.totalorder %s102, 0
  %p104 = pneg %p103
  %106 = shalt.err (%p104)

</llo_original>
